<compile_context>
chip_gen: v7x
topology: tpu7x:2x2x1
jax: 0.10.0
libtpu: 0.0.40
codegen_flags: <defaults>
</compile_context>

<pallas_src>
import functools

import jax
import jax.numpy as jnp
from jax import lax
from jax.experimental import pallas as pl
from jax.experimental.pallas import tpu as pltpu


def _double_conv_kernel(x_ref, w1_ref, b1_ref, w2_ref, b2_ref, o_ref, *, h):
    """Fused double 3x3 conv (pad=1) + ReLU over one strip of whole images.

    x_ref : (TR, W*Cin)        rows = (image, y), lanes = (x, cin); TR = images_per_block*H
    w1_ref: (3*W*Cin,  W*Cout) ky-stacked block-banded conv1 weights
    b1_ref: (1, W*Cout)        conv1 bias tiled over x
    w2_ref: (3*W*Cout, W*Cout) ky-stacked block-banded conv2 weights
    b2_ref: (1, W*Cout)
    o_ref : (TR, W*Cout)       lane-dense output strip
    """
    tr = x_ref.shape[0]
    y = lax.broadcasted_iota(jnp.int32, (tr, 1), 0) % h
    not_top = y != 0          # rows that have a y-1 neighbour inside their image
    not_bot = y != h - 1      # rows that have a y+1 neighbour inside their image

    def conv3x3(a, w_ref, b_ref):
        # +-1-row halo: XLU roll + VPU select (exact zero padding at image borders).
        a_up = jnp.where(not_top, pltpu.roll(a, 1, axis=0), 0.0)        # row r <- r-1
        a_dn = jnp.where(not_bot, pltpu.roll(a, tr - 1, axis=0), 0.0)   # row r <- r+1
        # Fold the 3 ky taps into K: one deep-K MXU contraction per conv.
        xk = jnp.concatenate([a_up, a, a_dn], axis=1)                   # (TR, 3*W*C)
        acc = jnp.dot(xk, w_ref[...], preferred_element_type=jnp.float32)
        return jnp.maximum(acc + b_ref[...], 0.0)

    mid = conv3x3(x_ref[...], w1_ref, b1_ref)      # conv1 + ReLU (stays on-chip)
    o_ref[...] = conv3x3(mid, w2_ref, b2_ref).astype(o_ref.dtype)


def _banded_weights(w_hwio, width):
    """HWIO (3, 3, Cin, Cout) -> (3*W*Cin, W*Cout) ky-stacked block-banded matrix.

    B[t*W*Cin + wi*Cin + c, wo*Cout + o] = w[t, wi - wo + 1, c, o] if |wi - wo| <= 1 else 0,
    so `[rows(y-1), rows(y), rows(y+1)] @ B` applies all nine taps at once, with exact zero
    padding at the left/right borders via band truncation.
    """
    kh, kw, cin, cout = w_hwio.shape
    wi = jnp.arange(width)[:, None]
    wo = jnp.arange(width)[None, :]
    dx = wi - wo + 1                                              # (W, W)
    sel = (dx[:, :, None] == jnp.arange(kw)[None, None, :])       # (W, W, 3)
    sel = sel.astype(w_hwio.dtype)
    banded = jnp.einsum("ijd,tdco->ticjo", sel, w_hwio)           # (3, W, Cin, W, Cout)
    return banded.reshape(kh * width * cin, width * cout)


@jax.jit
def double_conv_nhwc(x_nhwc, w1, b1, w2, b2):
    """Channels-last Double_Conv. x: (N,H,W,Cin); w*: HWIO. Returns (N,H,W,Cout)."""
    n, h, w, cin = x_nhwc.shape
    cout = w1.shape[-1]
    r = n * h

    # Strips of whole images per grid step (no halo exchange between strips).  Grow the
    # strip toward >=256 rows for DMA/compute overlap, but keep >=2 grid steps so both
    # v7x TensorCores get work and the pipeline has something to double-buffer.
    ipb = 1
    while n % (ipb * 2) == 0 and n // (ipb * 2) >= 2 and ipb * h < 256:
        ipb *= 2
    block_rows = ipb * h
    if block_rows % 8 != 0:               # sublane alignment fallback: one whole-batch block
        ipb, block_rows = n, r
    grid = (n // ipb,)

    # Layout glue is a free reshape: rows = (image, y), lanes = (x, channel).
    x_rows = x_nhwc.reshape(r, w * cin)

    wb1 = _banded_weights(w1, w)               # (3*W*Cin,  W*Cout)
    wb2 = _banded_weights(w2, w)               # (3*W*Cout, W*Cout)
    b1_row = jnp.tile(b1, w)[None, :]          # (1, W*Cout)
    b2_row = jnp.tile(b2, w)[None, :]

    flops = 2 * 9 * n * h * w * (cin + cout) * cout
    bytes_accessed = 4 * (x_rows.size + wb1.size + wb2.size + b1_row.size
                          + b2_row.size + r * w * cout)

    # VMEM: double-buffered activation/output strips + resident weights + in-kernel temps.
    block_bytes = 4 * (2 * block_rows * w * cin            # x strip, double-buffered
                       + 2 * block_rows * w * cout         # out strip, double-buffered
                       + wb1.size + wb2.size + b1_row.size + b2_row.size
                       + block_rows * (3 * w * cin + 3 * w * cout + 2 * w * cout))
    vmem_limit = int(min(96 * 1024 * 1024, max(4 * 1024 * 1024, 2 * block_bytes)))

    out_rows = pl.pallas_call(
        functools.partial(_double_conv_kernel, h=h),
        out_shape=jax.ShapeDtypeStruct((r, w * cout), x_nhwc.dtype),
        grid_spec=pltpu.PrefetchScalarGridSpec(
            num_scalar_prefetch=0,
            grid=grid,
            in_specs=[
                pl.BlockSpec((block_rows, w * cin), lambda i: (i, 0)),
                pl.BlockSpec((3 * w * cin, w * cout), lambda i: (0, 0)),   # VMEM-resident
                pl.BlockSpec((1, w * cout), lambda i: (0, 0)),
                pl.BlockSpec((3 * w * cout, w * cout), lambda i: (0, 0)),  # VMEM-resident
                pl.BlockSpec((1, w * cout), lambda i: (0, 0)),
            ],
            out_specs=pl.BlockSpec((block_rows, w * cout), lambda i: (i, 0)),
        ),
        compiler_params=pltpu.CompilerParams(
            dimension_semantics=("parallel",),
            vmem_limit_bytes=vmem_limit),
        cost_estimate=pl.CostEstimate(flops=int(flops), transcendentals=0,
                                      bytes_accessed=int(bytes_accessed)),
    )(x_rows, wb1, b1_row, wb2, b2_row)

    return out_rows.reshape(n, h, w, cout)


@jax.jit
def double_conv_nchw(x_nchw, w1, b1, w2, b2):
    """NCHW wrapper (PyTorch layout) -- transposes only at this test boundary."""
    x_nhwc = jnp.transpose(x_nchw, (0, 2, 3, 1))
    y = double_conv_nhwc(x_nhwc, w1, b1, w2, b2)
    return jnp.transpose(y, (0, 3, 1, 2))


def _reference(x_nchw, w1, b1, w2, b2):
    """Pure-JAX reference (NCHW, same semantics as the PyTorch Double_Conv)."""
    def conv(x, w, b):
        y = lax.conv_general_dilated(
            x, w, window_strides=(1, 1), padding=((1, 1), (1, 1)),
            dimension_numbers=("NCHW", "HWIO", "NCHW"))
        return jnp.maximum(y + b[None, :, None, None], 0.0)
    return conv(conv(x_nchw, w1, b1), w2, b2)


# TODO(synk): full UNet assembly (MaxPool2d, ConvTranspose2d ups, skip concats, final 1x1
# conv) composes this NHWC Double_Conv kernel; only the Double_Conv block is a Pallas
# kernel here.

if __name__ == "__main__":
    key = jax.random.PRNGKey(0)
    k_x, k_w1, k_b1, k_w2, k_b2 = jax.random.split(key, 5)

    N, Cin, Cout, H, W = 2, 4, 8, 16, 16

    x = jax.random.normal(k_x, (N, Cin, H, W), dtype=jnp.float32)
    # Deterministic synthetic params (HWIO layout for conv weights).
    w1 = jax.random.normal(k_w1, (3, 3, Cin, Cout), dtype=jnp.float32) * 0.1
    b1 = jax.random.normal(k_b1, (Cout,), dtype=jnp.float32) * 0.1
    w2 = jax.random.normal(k_w2, (3, 3, Cout, Cout), dtype=jnp.float32) * 0.1
    b2 = jax.random.normal(k_b2, (Cout,), dtype=jnp.float32) * 0.1

    out = jax.block_until_ready(double_conv_nchw(x, w1, b1, w2, b2))
    ref = jax.block_until_ready(_reference(x, w1, b1, w2, b2))

    assert out.shape == (N, Cout, H, W)
    assert jnp.allclose(out, ref, atol=1e-4, rtol=1e-4), "mismatch vs reference"

    print("KERNEL_OK")
</pallas_src>

<mosaic_0001>
module attributes {stable_mosaic.version = 11 : i64} {
  func.func @_double_conv_kernel(%arg0: i32, %arg1: memref<16x64xf32, #tpu.memory_space<vmem>>, %arg2: memref<192x128xf32, #tpu.memory_space<vmem>>, %arg3: memref<1x128xf32, #tpu.memory_space<vmem>>, %arg4: memref<384x128xf32, #tpu.memory_space<vmem>>, %arg5: memref<1x128xf32, #tpu.memory_space<vmem>>, %arg6: memref<16x128xf32, #tpu.memory_space<vmem>>) attributes {dimension_semantics = [#tpu.dimension_semantics<parallel>], iteration_bounds = array<i64: 2>, scalar_prefetch = 0 : i64, scratch_operands = 0 : i64, tpu.core_type = #tpu.core_type<tc>, window_params = [{transform_indices = @transform_0, window_bounds = array<i64: 16, 64>}, {pipeline_mode = #tpu.pipeline_mode<synchronous>, transform_indices = @transform_1, window_bounds = array<i64: 192, 128>}, {pipeline_mode = #tpu.pipeline_mode<synchronous>, transform_indices = @transform_2, window_bounds = array<i64: 1, 128>}, {pipeline_mode = #tpu.pipeline_mode<synchronous>, transform_indices = @transform_3, window_bounds = array<i64: 384, 128>}, {pipeline_mode = #tpu.pipeline_mode<synchronous>, transform_indices = @transform_4, window_bounds = array<i64: 1, 128>}, {transform_indices = @transform_5, window_bounds = array<i64: 16, 128>}]} {
    %0 = tpu.iota {dimensions = array<i32: 0>} : vector<16x1xi32>
    %c16_i32 = arith.constant 16 : i32
    %c0_i32 = arith.constant 0 : i32
    %1 = arith.cmpi eq, %c16_i32, %c0_i32 : i32
    %c1_i32 = arith.constant 1 : i32
    %2 = arith.select %1, %c1_i32, %c16_i32 : i32
    %3 = vector.broadcast %2 : i32 to vector<16x1xi32>
    %4 = arith.remsi %0, %3 : vector<16x1xi32>
    %c0_i32_0 = arith.constant 0 : i32
    %5 = vector.broadcast %c0_i32_0 : i32 to vector<16x1xi32>
    %6 = arith.cmpi ne, %4, %5 : vector<16x1xi32>
    %c0_i32_1 = arith.constant 0 : i32
    %7 = vector.broadcast %c0_i32_1 : i32 to vector<16x1xi32>
    %8 = arith.cmpi slt, %4, %7 : vector<16x1xi32>
    %c0_i32_2 = arith.constant 0 : i32
    %9 = arith.cmpi slt, %2, %c0_i32_2 : i32
    %10 = vector.broadcast %9 : i1 to vector<16x1xi1>
    %11 = vector.broadcast %10 : vector<16x1xi1> to vector<16x1xi1>
    %12 = arith.xori %8, %11 : vector<16x1xi1>
    %13 = arith.andi %12, %6 : vector<16x1xi1>
    %14 = vector.broadcast %2 : i32 to vector<16x1xi32>
    %15 = arith.addi %4, %14 : vector<16x1xi32>
    %16 = arith.select %13, %15, %4 : vector<16x1xi1>, vector<16x1xi32>
    %c0_i32_3 = arith.constant 0 : i32
    %17 = vector.broadcast %c0_i32_3 : i32 to vector<16x1xi32>
    %18 = arith.cmpi ne, %16, %17 : vector<16x1xi32>
    %c15_i32 = arith.constant 15 : i32
    %19 = vector.broadcast %c15_i32 : i32 to vector<16x1xi32>
    %20 = arith.cmpi ne, %16, %19 : vector<16x1xi32>
    %c0 = arith.constant 0 : index
    %c0_4 = arith.constant 0 : index
    %21 = vector.load %arg1[%c0, %c0_4] : memref<16x64xf32, #tpu.memory_space<vmem>>, vector<16x64xf32>
    %c1_i32_5 = arith.constant 1 : i32
    %22 = tpu.dynamic_rotate %21 by %c1_i32_5 dim 0 : vector<16x64xf32>, i32 -> vector<16x64xf32>
    %cst = arith.constant 0.000000e+00 : f32
    %23 = vector.shape_cast %18 : vector<16x1xi1> to vector<16x1xi1>
    %24 = vector.broadcast %23 : vector<16x1xi1> to vector<16x64xi1>
    %25 = vector.broadcast %cst : f32 to vector<16x64xf32>
    %26 = arith.select %24, %22, %25 : vector<16x64xi1>, vector<16x64xf32>
    %c15_i32_6 = arith.constant 15 : i32
    %27 = tpu.dynamic_rotate %21 by %c15_i32_6 dim 0 : vector<16x64xf32>, i32 -> vector<16x64xf32>
    %cst_7 = arith.constant 0.000000e+00 : f32
    %28 = vector.shape_cast %20 : vector<16x1xi1> to vector<16x1xi1>
    %29 = vector.broadcast %28 : vector<16x1xi1> to vector<16x64xi1>
    %30 = vector.broadcast %cst_7 : f32 to vector<16x64xf32>
    %31 = arith.select %29, %27, %30 : vector<16x64xi1>, vector<16x64xf32>
    %32 = tpu.concatenate %26, %21, %31 in 1 : vector<16x64xf32>, vector<16x64xf32>, vector<16x64xf32> -> vector<16x192xf32>
    %c0_8 = arith.constant 0 : index
    %c0_9 = arith.constant 0 : index
    %33 = vector.load %arg2[%c0_8, %c0_9] : memref<192x128xf32, #tpu.memory_space<vmem>>, vector<192x128xf32>
    %cst_10 = arith.constant dense<0.000000e+00> : vector<16x128xf32>
    %34 = tpu.matmul %32, %33, %cst_10 {dimension_numbers = #tpu.dot_dimension_numbers<[1], [0], [0], [1], [0, 0, 1, 1], [], []>} : vector<16x192xf32>, vector<192x128xf32>, vector<16x128xf32> -> vector<16x128xf32>
    %c0_11 = arith.constant 0 : index
    %c0_12 = arith.constant 0 : index
    %35 = vector.load %arg3[%c0_11, %c0_12] : memref<1x128xf32, #tpu.memory_space<vmem>>, vector<1x128xf32>
    %36 = vector.broadcast %35 : vector<1x128xf32> to vector<16x128xf32>
    %37 = arith.addf %34, %36 : vector<16x128xf32>
    %cst_13 = arith.constant 0.000000e+00 : f32
    %38 = vector.broadcast %cst_13 : f32 to vector<16x128xf32>
    %39 = arith.maximumf %37, %38 : vector<16x128xf32>
    %c1_i32_14 = arith.constant 1 : i32
    %40 = tpu.dynamic_rotate %39 by %c1_i32_14 dim 0 : vector<16x128xf32>, i32 -> vector<16x128xf32>
    %cst_15 = arith.constant 0.000000e+00 : f32
    %41 = vector.shape_cast %18 : vector<16x1xi1> to vector<16x1xi1>
    %42 = vector.broadcast %41 : vector<16x1xi1> to vector<16x128xi1>
    %43 = vector.broadcast %cst_15 : f32 to vector<16x128xf32>
    %44 = arith.select %42, %40, %43 : vector<16x128xi1>, vector<16x128xf32>
    %c15_i32_16 = arith.constant 15 : i32
    %45 = tpu.dynamic_rotate %39 by %c15_i32_16 dim 0 : vector<16x128xf32>, i32 -> vector<16x128xf32>
    %cst_17 = arith.constant 0.000000e+00 : f32
    %46 = vector.shape_cast %20 : vector<16x1xi1> to vector<16x1xi1>
    %47 = vector.broadcast %46 : vector<16x1xi1> to vector<16x128xi1>
    %48 = vector.broadcast %cst_17 : f32 to vector<16x128xf32>
    %49 = arith.select %47, %45, %48 : vector<16x128xi1>, vector<16x128xf32>
    %50 = tpu.concatenate %44, %39, %49 in 1 : vector<16x128xf32>, vector<16x128xf32>, vector<16x128xf32> -> vector<16x384xf32>
    %c0_18 = arith.constant 0 : index
    %c0_19 = arith.constant 0 : index
    %51 = vector.load %arg4[%c0_18, %c0_19] : memref<384x128xf32, #tpu.memory_space<vmem>>, vector<384x128xf32>
    %cst_20 = arith.constant dense<0.000000e+00> : vector<16x128xf32>
    %52 = tpu.matmul %50, %51, %cst_20 {dimension_numbers = #tpu.dot_dimension_numbers<[1], [0], [0], [1], [0, 0, 1, 1], [], []>} : vector<16x384xf32>, vector<384x128xf32>, vector<16x128xf32> -> vector<16x128xf32>
    %c0_21 = arith.constant 0 : index
    %c0_22 = arith.constant 0 : index
    %53 = vector.load %arg5[%c0_21, %c0_22] : memref<1x128xf32, #tpu.memory_space<vmem>>, vector<1x128xf32>
    %54 = vector.broadcast %53 : vector<1x128xf32> to vector<16x128xf32>
    %55 = arith.addf %52, %54 : vector<16x128xf32>
    %cst_23 = arith.constant 0.000000e+00 : f32
    %56 = vector.broadcast %cst_23 : f32 to vector<16x128xf32>
    %57 = arith.maximumf %55, %56 : vector<16x128xf32>
    %c0_24 = arith.constant 0 : index
    %c0_25 = arith.constant 0 : index
    %58 = vector.load %arg6[%c0_24, %c0_25] : memref<16x128xf32, #tpu.memory_space<vmem>>, vector<16x128xf32>
    tpu.vector_store %arg6[%c0_24, %c0_25], %57 {strides = array<i32>} : memref<16x128xf32, #tpu.memory_space<vmem>>, vector<16x128xf32>,
    return
  }
  func.func @transform_0(%arg0: i32) -> (i32, i32) {
    %c0_i32 = arith.constant 0 : i32
    %c0_i32_0 = arith.constant 0 : i32
    return %arg0, %c0_i32 : i32, i32
  }
  func.func @transform_1(%arg0: i32) -> (i32, i32) {
    %c0_i32 = arith.constant 0 : i32
    %c0_i32_0 = arith.constant 0 : i32
    %c0_i32_1 = arith.constant 0 : i32
    return %c0_i32, %c0_i32_0 : i32, i32
  }
  func.func @transform_2(%arg0: i32) -> (i32, i32) {
    %c0_i32 = arith.constant 0 : i32
    %c0_i32_0 = arith.constant 0 : i32
    %c0_i32_1 = arith.constant 0 : i32
    return %c0_i32, %c0_i32_0 : i32, i32
  }
  func.func @transform_3(%arg0: i32) -> (i32, i32) {
    %c0_i32 = arith.constant 0 : i32
    %c0_i32_0 = arith.constant 0 : i32
    %c0_i32_1 = arith.constant 0 : i32
    return %c0_i32, %c0_i32_0 : i32, i32
  }
  func.func @transform_4(%arg0: i32) -> (i32, i32) {
    %c0_i32 = arith.constant 0 : i32
    %c0_i32_0 = arith.constant 0 : i32
    %c0_i32_1 = arith.constant 0 : i32
    return %c0_i32, %c0_i32_0 : i32, i32
  }
  func.func @transform_5(%arg0: i32) -> (i32, i32) {
    %c0_i32 = arith.constant 0 : i32
    %c0_i32_0 = arith.constant 0 : i32
    return %arg0, %c0_i32 : i32, i32
  }
}

</mosaic_0001>

<llo_original>
// kernel: tile.13
$region0: #{tile.13}
  #allocation0 [shape = 's32[1]{0}', space=sflag, size = 0x4, scoped, tag = 'scoped memory for tile.13']
  %s0 = inlined_call_operand.vmem [shape: f32[8], index: 0, kind: input, shape index: {}]
  %s1 = inlined_call_operand.vmem [shape: f32[16,8], index: 1, kind: output, shape index: {}]
  // Predicated region
  $region2: #{tile.13} parent=0 // pred_check
    _
  $region3: #{tile.13} parent=0 // pred_check_branch
    %3 = sbr.rel (0) target = $region5
  $region4: #{tile.13} parent=0 // pred_region
    _
  $region5: #{tile.13} parent=0 // pred_fallthru
    _
  %v4 = vld [vmem:[%s0] ss:$0 sm:$0xff]
  %5 = vst [vmem:[%s1] sm:$0xff] %v4
  %s6 = scalar_lea.vmem %s1, 8
  %7 = vst [vmem:[%s6] sm:$0xff] %v4

// kernel: tile.14
$region0: #{tile.14}
  %s0 = inlined_call_operand.vmem [shape: f32[16,8], index: 0, kind: input, shape index: {}]
  %s1 = inlined_call_operand.vmem [shape: f32[1,128], index: 1, kind: output, shape index: {}]
  $region1: #{tile.14} parent=0
    #allocation0 [shape = 'u8[4096]{0}', space=vmem, size = 0x1000, scoped, tag = 'scoped mem for output reshape']
    %v2 = vld [vmem:[%s0] sm:$0x1]
    %vm3 = vcmask 64512
    %4 = vst.msk [vmem:[#allocation0] sm:$0x1] %vm3, %v2
    %s5 = scalar_lea.vmem %s0, 15
    %v6 = vld [vmem:[%s5] sm:$0x1]
    %7 = vrot.lane.b32.xlu0 %v6, 120
    %v8 = vpop.permute.xlu0 %7
    %vm9 = vcmask 1048512
    %10 = vst.msk [vmem:[#allocation0] sm:$0x1] %vm9, %v8
    %s11 = scalar_lea.vmem %s0, 14
    %v12 = vld [vmem:[%s11] sm:$0x1]
    %13 = vrot.lane.b32.xlu0 %v12, 112
    %v14 = vpop.permute.xlu0 %13
    %vm15 = vcmask 982912
    %16 = vst.msk [vmem:[#allocation0] sm:$0x1] %vm15, %v14
    %s17 = scalar_lea.vmem %s0, 13
    %v18 = vld [vmem:[%s17] sm:$0x1]
    %19 = vrot.lane.b32.xlu0 %v18, 104
    %v20 = vpop.permute.xlu0 %19
    %vm21 = vcmask 917312
    %22 = vst.msk [vmem:[#allocation0] sm:$0x1] %vm21, %v20
    %s23 = scalar_lea.vmem %s0, 12
    %v24 = vld [vmem:[%s23] sm:$0x1]
    %25 = vrot.lane.b32.xlu0 %v24, 96
    %v26 = vpop.permute.xlu0 %25
    %vm27 = vcmask 851712
    %28 = vst.msk [vmem:[#allocation0] sm:$0x1] %vm27, %v26
    %s29 = scalar_lea.vmem %s0, 11
    %v30 = vld [vmem:[%s29] sm:$0x1]
    %31 = vrot.lane.b32.xlu0 %v30, 88
    %v32 = vpop.permute.xlu0 %31
    %vm33 = vcmask 786112
    %34 = vst.msk [vmem:[#allocation0] sm:$0x1] %vm33, %v32
    %s35 = scalar_lea.vmem %s0, 10
    %v36 = vld [vmem:[%s35] sm:$0x1]
    %37 = vrot.lane.b32.xlu0 %v36, 80
    %v38 = vpop.permute.xlu0 %37
    %vm39 = vcmask 720512
    %40 = vst.msk [vmem:[#allocation0] sm:$0x1] %vm39, %v38
    %s41 = scalar_lea.vmem %s0, 9
    %v42 = vld [vmem:[%s41] sm:$0x1]
    %43 = vrot.lane.b32.xlu0 %v42, 72
    %v44 = vpop.permute.xlu0 %43
    %vm45 = vcmask 654912
    %46 = vst.msk [vmem:[#allocation0] sm:$0x1] %vm45, %v44
    %s47 = scalar_lea.vmem %s0, 8
    %v48 = vld [vmem:[%s47] sm:$0x1]
    %49 = vrot.lane.b32.xlu0 %v48, 64
    %v50 = vpop.permute.xlu0 %49
    %vm51 = vcmask 589312
    %52 = vst.msk [vmem:[#allocation0] sm:$0x1] %vm51, %v50
    %s53 = scalar_lea.vmem %s0, 7
    %v54 = vld [vmem:[%s53] sm:$0x1]
    %55 = vrot.lane.b32.xlu0 %v54, 56
    %v56 = vpop.permute.xlu0 %55
    %vm57 = vcmask 523712
    %58 = vst.msk [vmem:[#allocation0] sm:$0x1] %vm57, %v56
    %s59 = scalar_lea.vmem %s0, 6
    %v60 = vld [vmem:[%s59] sm:$0x1]
    %61 = vrot.lane.b32.xlu0 %v60, 48
    %v62 = vpop.permute.xlu0 %61
    %vm63 = vcmask 458112
    %64 = vst.msk [vmem:[#allocation0] sm:$0x1] %vm63, %v62
    %s65 = scalar_lea.vmem %s0, 5
    %v66 = vld [vmem:[%s65] sm:$0x1]
    %67 = vrot.lane.b32.xlu0 %v66, 40
    %v68 = vpop.permute.xlu0 %67
    %vm69 = vcmask 392512
    %70 = vst.msk [vmem:[#allocation0] sm:$0x1] %vm69, %v68
    %s71 = scalar_lea.vmem %s0, 4
    %v72 = vld [vmem:[%s71] sm:$0x1]
    %73 = vrot.lane.b32.xlu0 %v72, 32
    %v74 = vpop.permute.xlu0 %73
    %vm75 = vcmask 326912
    %76 = vst.msk [vmem:[#allocation0] sm:$0x1] %vm75, %v74
    %s77 = scalar_lea.vmem %s0, 3
    %v78 = vld [vmem:[%s77] sm:$0x1]
    %79 = vrot.lane.b32.xlu0 %v78, 24
    %v80 = vpop.permute.xlu0 %79
    %vm81 = vcmask 261312
    %82 = vst.msk [vmem:[#allocation0] sm:$0x1] %vm81, %v80
    %s83 = scalar_lea.vmem %s0, 2
    %v84 = vld [vmem:[%s83] sm:$0x1]
    %85 = vrot.lane.b32.xlu0 %v84, 16
    %v86 = vpop.permute.xlu0 %85
    %vm87 = vcmask 195712
    %88 = vst.msk [vmem:[#allocation0] sm:$0x1] %vm87, %v86
    %s89 = scalar_lea.vmem %s0, 1
    %v90 = vld [vmem:[%s89] sm:$0x1]
    %91 = vrot.lane.b32.xlu0 %v90, 8
    %v92 = vpop.permute.xlu0 %91
    %vm93 = vcmask 130112
    %94 = vst.msk [vmem:[#allocation0] sm:$0x1] %vm93, %v92
    %s96 = sshllo.u32 0, 1
    %v98 = vld [vmem:[#allocation0] sm:%s96]
    %s99 = sshllo.u32 0, 1
    %100 = vst [vmem:[%s1] sm:%s99] %v98

// kernel: double_conv_nhwc.1
$region0: #{double_conv_nhwc.1}
  #allocation0 [shape = 'u32[]', space=smem, size = 0x4, offset = 0x4, fixed_abs, tag = 'smem constant byte address 0x4 - core index']
  #allocation1 [shape = 'u32[144,128]{1,0:T(1,128)}', space=vmem, size = 0x12000, scoped, tag = 'internal scratch']
  %s0 = inlined_call_operand.vmem [shape: f32[32,64], index: 0, kind: input, shape index: {}]
  %s1 = inlined_call_operand.vmem [shape: f32[192,128], index: 1, kind: input, shape index: {}]
  %s2 = inlined_call_operand.vmem [shape: f32[1,128], index: 2, kind: input, shape index: {}]
  %s3 = inlined_call_operand.vmem [shape: f32[384,128], index: 3, kind: input, shape index: {}]
  %s4 = inlined_call_operand.vmem [shape: f32[1,128], index: 4, kind: input, shape index: {}]
  %s5 = inlined_call_operand.vmem [shape: f32[32,128], index: 5, kind: output, shape index: {}]
  %s6 = sld [smem:[#allocation0]]
  $region53: #{double_conv_nhwc.1} parent=0
    _
  %s8 = ssub.s32 1, %s6
  %s9 = scalar_select 0, %s8, %s6
  loop: start=0, step=1, limit=4
  $region2: #{double_conv_nhwc.1} parent=0 // loop_pre_header
    _
  $region3: #{double_conv_nhwc.1} parent=0 // loop_header
    %s11 = sphi 0, %s15
    %p12 = scmp.ge.s32.totalorder %s11, 4
    %s21 = sphi 0, %s23
    %s24 = sphi 0, %s21
    %s25 = sphi 0, %s24
    %s41 = sphi 0, %s25
    %s45 = sphi 0, %s45
    %s47 = sphi 0, %s45
    %s48 = sphi 0, %s47
    %s62 = sphi 0, %s48
    %s66 = sphi 0, %s66
    %s68 = sphi 0, %s66
    %s69 = sphi 0, %s68
    %s83 = sphi 0, %s69
    %s87 = sphi 0, %s87
    %s89 = sphi 0, %s87
    %s90 = sphi 0, %s89
    %s104 = sphi 0, %s90
    %s108 = sphi 0, %s108
    %s110 = sphi 0, %s108
    %s111 = sphi 0, %s110
    %s125 = sphi 0, %s111
    %s131 = sphi 0, %s133
    %s134 = sphi 0, %s131
    %s135 = sphi 0, %s134
    %s151 = sphi 0, %s135
  $region4: #{double_conv_nhwc.1} parent=0 // loop_header_branch
    %14 = sbr.rel (%p12) target = $region8
  $region5: #{double_conv_nhwc.1} parent=0 // loop_body
    %s16 = ssub.s32 %s11, 1
    %s17 = ssub.s32 %s11, 2
    %s18 = sadd.s32 %s11, 1
    %s19 = ssub.s32 %s11, %s18
    %p20 = scmp.eq.s32.totalorder %s19, 0
    %s22 = sadd.s32 %s21, 1
    %s23 = scalar_select %p20, %s21, %s22
    %p26 = pneg %p20
    %p27 = scmp.eq.s32.totalorder %s11, 1
    %p28 = por %p26, %p27
    %p29 = scmp.ne.s32.totalorder %s21, %s24
    %p30 = scmp.eq.s32.totalorder %s11, 0
    %p31 = por %p29, %p30
    %p32 = scmp.ne.s32.totalorder %s21, %s24
    %p33 = scmp.eq.s32.totalorder %s16, 1
    %p34 = por %p32, %p33
    %p35 = scmp.ne.s32.totalorder %s24, %s25
    %p36 = scmp.eq.s32.totalorder %s16, 0
    %p37 = por %p35, %p36
    %p38 = scmp.ne.s32.totalorder %s24, %s25
    %p39 = scmp.eq.s32.totalorder %s17, 1
    %p40 = por %p38, %p39
    %p42 = scmp.ne.s32.totalorder %s25, %s41
    %p43 = scmp.eq.s32.totalorder %s17, 0
    %p44 = por %p42, %p43
    %s46 = sadd.s32 %s45, 1
    %p49 = scmp.eq.s32.totalorder %s11, 1
    %p50 = scmp.ne.s32.totalorder %s45, %s47
    %p51 = scmp.eq.s32.totalorder %s11, 0
    %p52 = por %p50, %p51
    %p53 = scmp.ne.s32.totalorder %s45, %s47
    %p54 = scmp.eq.s32.totalorder %s16, 1
    %p55 = por %p53, %p54
    %p56 = scmp.ne.s32.totalorder %s47, %s48
    %p57 = scmp.eq.s32.totalorder %s16, 0
    %p58 = por %p56, %p57
    %p59 = scmp.ne.s32.totalorder %s47, %s48
    %p60 = scmp.eq.s32.totalorder %s17, 1
    %p61 = por %p59, %p60
    %p63 = scmp.ne.s32.totalorder %s48, %s62
    %p64 = scmp.eq.s32.totalorder %s17, 0
    %p65 = por %p63, %p64
    %s67 = sadd.s32 %s66, 1
    %p70 = scmp.eq.s32.totalorder %s11, 1
    %p71 = scmp.ne.s32.totalorder %s66, %s68
    %p72 = scmp.eq.s32.totalorder %s11, 0
    %p73 = por %p71, %p72
    %p74 = scmp.ne.s32.totalorder %s66, %s68
    %p75 = scmp.eq.s32.totalorder %s16, 1
    %p76 = por %p74, %p75
    %p77 = scmp.ne.s32.totalorder %s68, %s69
    %p78 = scmp.eq.s32.totalorder %s16, 0
    %p79 = por %p77, %p78
    %p80 = scmp.ne.s32.totalorder %s68, %s69
    %p81 = scmp.eq.s32.totalorder %s17, 1
    %p82 = por %p80, %p81
    %p84 = scmp.ne.s32.totalorder %s69, %s83
    %p85 = scmp.eq.s32.totalorder %s17, 0
    %p86 = por %p84, %p85
    %s88 = sadd.s32 %s87, 1
    %p91 = scmp.eq.s32.totalorder %s11, 1
    %p92 = scmp.ne.s32.totalorder %s87, %s89
    %p93 = scmp.eq.s32.totalorder %s11, 0
    %p94 = por %p92, %p93
    %p95 = scmp.ne.s32.totalorder %s87, %s89
    %p96 = scmp.eq.s32.totalorder %s16, 1
    %p97 = por %p95, %p96
    %p98 = scmp.ne.s32.totalorder %s89, %s90
    %p99 = scmp.eq.s32.totalorder %s16, 0
    %p100 = por %p98, %p99
    %p101 = scmp.ne.s32.totalorder %s89, %s90
    %p102 = scmp.eq.s32.totalorder %s17, 1
    %p103 = por %p101, %p102
    %p105 = scmp.ne.s32.totalorder %s90, %s104
    %p106 = scmp.eq.s32.totalorder %s17, 0
    %p107 = por %p105, %p106
    %s109 = sadd.s32 %s108, 1
    %p112 = scmp.eq.s32.totalorder %s11, 1
    %p113 = scmp.ne.s32.totalorder %s108, %s110
    %p114 = scmp.eq.s32.totalorder %s11, 0
    %p115 = por %p113, %p114
    %p116 = scmp.ne.s32.totalorder %s108, %s110
    %p117 = scmp.eq.s32.totalorder %s16, 1
    %p118 = por %p116, %p117
    %p119 = scmp.ne.s32.totalorder %s110, %s111
    %p120 = scmp.eq.s32.totalorder %s16, 0
    %p121 = por %p119, %p120
    %p122 = scmp.ne.s32.totalorder %s110, %s111
    %p123 = scmp.eq.s32.totalorder %s17, 1
    %p124 = por %p122, %p123
    %p126 = scmp.ne.s32.totalorder %s111, %s125
    %p127 = scmp.eq.s32.totalorder %s17, 0
    %p128 = por %p126, %p127
    %s129 = ssub.s32 %s11, %s18
    %p130 = scmp.eq.s32.totalorder %s129, 0
    %s132 = sadd.s32 %s131, 1
    %s133 = scalar_select %p130, %s131, %s132
    %p136 = pneg %p130
    %p137 = scmp.eq.s32.totalorder %s11, 1
    %p138 = por %p136, %p137
    %p139 = scmp.ne.s32.totalorder %s131, %s134
    %p140 = scmp.eq.s32.totalorder %s11, 0
    %p141 = por %p139, %p140
    %p142 = scmp.ne.s32.totalorder %s131, %s134
    %p143 = scmp.eq.s32.totalorder %s16, 1
    %p144 = por %p142, %p143
    %p145 = scmp.ne.s32.totalorder %s134, %s135
    %p146 = scmp.eq.s32.totalorder %s16, 0
    %p147 = por %p145, %p146
    %p148 = scmp.ne.s32.totalorder %s134, %s135
    %p149 = scmp.eq.s32.totalorder %s17, 1
    %p150 = por %p148, %p149
    %p152 = scmp.ne.s32.totalorder %s135, %s151
    %p153 = scmp.eq.s32.totalorder %s17, 0
    %p154 = por %p152, %p153
    %p155 = scmp.le.s32.totalorder 1, %s11
    %p156 = scmp.lt.s32.totalorder %s11, 3
    %p157 = pnand %p155, %p156
    %p158 = pneg %p157
    // Predicated region
    $region9: #{double_conv_nhwc.1} parent=5 // pred_check
      _
    $region10: #{double_conv_nhwc.1} parent=5 // pred_check_branch
      %160 = sbr.rel (%p157) target = $region12
    $region11: #{double_conv_nhwc.1} parent=5 // pred_region
      %s161 = ssub.s32 %s11, 1
      // Predicated region
      $region13: #{double_conv_nhwc.1} parent=11 // pred_check
        %p162 = pneg %p58
      $region14: #{double_conv_nhwc.1} parent=11 // pred_check_branch
        %164 = sbr.rel (%p162) target = $region16
      $region15: #{double_conv_nhwc.1} parent=11 // pred_region
        _
      $region16: #{double_conv_nhwc.1} parent=11 // pred_fallthru
        _
      // Predicated region
      $region17: #{double_conv_nhwc.1} parent=11 // pred_check
        %p165 = pneg %p79
      $region18: #{double_conv_nhwc.1} parent=11 // pred_check_branch
        %167 = sbr.rel (%p165) target = $region20
      $region19: #{double_conv_nhwc.1} parent=11 // pred_region
        _
      $region20: #{double_conv_nhwc.1} parent=11 // pred_fallthru
        _
      // Predicated region
      $region21: #{double_conv_nhwc.1} parent=11 // pred_check
        %p168 = pneg %p100
      $region22: #{double_conv_nhwc.1} parent=11 // pred_check_branch
        %170 = sbr.rel (%p168) target = $region24
      $region23: #{double_conv_nhwc.1} parent=11 // pred_region
        _
      $region24: #{double_conv_nhwc.1} parent=11 // pred_fallthru
        _
      // Predicated region
      $region25: #{double_conv_nhwc.1} parent=11 // pred_check
        %p171 = pneg %p121
      $region26: #{double_conv_nhwc.1} parent=11 // pred_check_branch
        %173 = sbr.rel (%p171) target = $region28
      $region27: #{double_conv_nhwc.1} parent=11 // pred_region
        _
      $region28: #{double_conv_nhwc.1} parent=11 // pred_fallthru
        _
    $region12: #{double_conv_nhwc.1} parent=5 // pred_fallthru
      _
    %p174 = scmp.lt.s32.totalorder %s11, 2
    // Predicated region
    $region29: #{double_conv_nhwc.1} parent=5 // pred_check
      %p175 = pneg %p174
    $region30: #{double_conv_nhwc.1} parent=5 // pred_check_branch
      %177 = sbr.rel (%p175) target = $region32
    $region31: #{double_conv_nhwc.1} parent=5 // pred_region
      // Predicated region
      $region33: #{double_conv_nhwc.1} parent=31 // pred_check
        %p178 = pneg %p31
      $region34: #{double_conv_nhwc.1} parent=31 // pred_check_branch
        %180 = sbr.rel (%p178) target = $region36
      $region35: #{double_conv_nhwc.1} parent=31 // pred_region
        %s181 = smul.u32 2, %s11
        %p182 = scmp.lt.s32.totalorder %s181, 3
        %s183 = scalar_select %p182, %s181, 3
        %s184 = smul.addr %s183, 8
        %s185 = scalar_lea.vmem %s0, %s184
        %s186 = smul.u32 2, %s11
      $region36: #{double_conv_nhwc.1} parent=31 // pred_fallthru
        _
    $region32: #{double_conv_nhwc.1} parent=5 // pred_fallthru
      _
    %p187 = scmp.le.s32.totalorder 1, %s11
    %p188 = scmp.lt.s32.totalorder %s11, 3
    %p189 = pnand %p187, %p188
    %p190 = pneg %p189
    // Predicated region
    $region37: #{double_conv_nhwc.1} parent=5 // pred_check
      _
    $region38: #{double_conv_nhwc.1} parent=5 // pred_check_branch
      %192 = sbr.rel (%p189) target = $region40
    $region39: #{double_conv_nhwc.1} parent=5 // pred_region
      %s193 = ssub.s32 %s11, 1
      %s194 = smul.u32 2, %s16
      %p195 = scmp.lt.s32.totalorder %s194, 3
      %s196 = scalar_select %p195, %s194, 3
      %s197 = smul.addr %s196, 8
      %s198 = scalar_lea.vmem %s0, %s197
      %p199 = pneg %p37
      %p200 = pneg %p34
      %p201 = pneg %p58
      %p202 = pneg %p55
      %p203 = pneg %p79
      %p204 = pneg %p76
      %p205 = pneg %p100
      %p206 = pneg %p97
      %p207 = pneg %p121
      %p208 = pneg %p118
      %p209 = pneg %p147
      %p210 = pneg %p144
      %s211 = smul.u32 2, %s16
      %p212 = scmp.lt.s32.totalorder %s211, 3
      %s213 = scalar_select %p212, %s211, 3
      %s214 = smul.addr %s213, 8
      %s215 = scalar_lea.vmem %s5, %s214
      %s216 = smul.u32 2, %s16
      %p217 = scmp.lt.s32.totalorder %s216, 3
      %s218 = scalar_select %p217, %s216, 3
      %s219 = smul.addr %s218, 8
      %s220 = scalar_lea.vmem %s0, %s219
      %s221 = smul.u32 2, %s16
      %s222 = smul.u32 2, %s16
      %p223 = scmp.lt.s32.totalorder %s222, 3
      %s224 = scalar_select %p223, %s222, 3
      %s225 = smul.addr %s224, 8
      %s226 = scalar_lea.vmem %s5, %s225
      %s227 = smul.u32 2, %s16
      %v228 = vlaneseq
      %v229 = vshrl.u32 %v228, 7
      %v230 = vadd.s32 %v229, 8
      %vm231 = vcmp.lt.s32.totalorder %v229, 0
      %v232 = vsub.s32 0, %v229
      %v233 = vsel %vm231, %v232, %v229
      %v234 = vshrl.u32 %v233, 4
      %v235 = vand.u32 %v233, 15
      %v236 = vsub.s32 0, %v235
      %v237 = vsel %vm231, %v236, %v235
      %vm238 = vcmp.lt.s32.totalorder %v230, 0
      %v239 = vsub.s32 0, %v230
      %v240 = vsel %vm238, %v239, %v230
      %v241 = vshrl.u32 %v240, 4
      %v242 = vand.u32 %v240, 15
      %v243 = vsub.s32 0, %v242
      %v244 = vsel %vm238, %v243, %v242
      %vm245 = vcmp.ne.s32.totalorder %v237, 0
      %vm246 = vcmp.ne.s32.totalorder %v244, 0
      %vm247 = vcmp.lt.s32.totalorder %v237, 0
      %vm248 = vcmp.lt.s32.totalorder %v244, 0
      %vm249 = vmand %vm247, %vm245
      %vm250 = vmand %vm248, %vm246
      %v251 = vadd.s32 %v237, 16
      %v252 = vadd.s32 %v244, 16
      %v253 = vsel %vm249, %v251, %v237
      %v254 = vsel %vm250, %v252, %v244
      %vm255 = vcmp.ne.s32.totalorder %v253, 0
      %vm256 = vcmp.ne.s32.totalorder %v254, 0
      %vm257 = vcmp.ne.s32.totalorder %v253, 15
      %vm258 = vcmp.ne.s32.totalorder %v254, 15
      %v259 = vld [vmem:[%s220] sm:$0xff]
      %v260 = vld [vmem:[%s220 + $0x8] sm:$0xff]
      %v261 = vrot.slane %v259, 7
      %v262 = vrot.slane %v260, 7
      %vm263 = vcmp.lt.s32.totalorder %v229, 1
      %v264 = vsel %vm263, %v261, %v262
      %v265 = vsel %vm263, %v262, %v261
      %v266 = vsel %vm255, 1, 0
      %v267 = vsel %vm256, 1, 0
      %vm268 = vcmp.eq.s32.totalorder %v266, 1
      %vm269 = vcmp.eq.s32.totalorder %v267, 1
      %v270 = vsel %vm268, %v265, 0.0
      %v271 = vsel %vm269, %v264, 0.0
      %v272 = vrot.slane %v259, 1
      %v273 = vrot.slane %v260, 1
      %vm274 = vcmp.lt.s32.totalorder %v229, 7
      %v275 = vsel %vm274, %v272, %v273
      %v276 = vsel %vm274, %v273, %v272
      %v277 = vsel %vm257, 1, 0
      %v278 = vsel %vm258, 1, 0
      %vm279 = vcmp.eq.s32.totalorder %v277, 1
      %vm280 = vcmp.eq.s32.totalorder %v278, 1
      %v281 = vsel %vm279, %v275, 0.0
      %v282 = vsel %vm280, %v276, 0.0
      %285 = vrot.lane.b32.xlu0 %v259, 64
      %v286 = vpop.permute.xlu0 %285
      %287 = vrot.lane.b32.xlu0 %v260, 64
      %v288 = vpop.permute.xlu0 %287
      %vm291 = vcmask 523264
      %v292 = vsel %vm291, %v270, %v286
      %v293 = vsel %vm291, %v271, %v288
      %v294 = vld [vmem:[%s1] sm:$0xff]
      %v295 = vld [vmem:[%s1 + $0x8] sm:$0xff]
      %v296 = vld [vmem:[%s1 + $0x10] sm:$0xff]
      %v297 = vld [vmem:[%s1 + $0x18] sm:$0xff]
      %v298 = vld [vmem:[%s1 + $0x20] sm:$0xff]
      %v299 = vld [vmem:[%s1 + $0x28] sm:$0xff]
      %v300 = vld [vmem:[%s1 + $0x30] sm:$0xff]
      %v301 = vld [vmem:[%s1 + $0x38] sm:$0xff]
      %v302 = vld [vmem:[%s1 + $0x40] sm:$0xff]
      %v303 = vld [vmem:[%s1 + $0x48] sm:$0xff]
      %v304 = vld [vmem:[%s1 + $0x50] sm:$0xff]
      %v305 = vld [vmem:[%s1 + $0x58] sm:$0xff]
      %v306 = vld [vmem:[%s1 + $0x60] sm:$0xff]
      %v307 = vld [vmem:[%s1 + $0x68] sm:$0xff]
      %v308 = vld [vmem:[%s1 + $0x70] sm:$0xff]
      %v309 = vld [vmem:[%s1 + $0x78] sm:$0xff]
      %v310 = vld [vmem:[%s1 + $0x80] sm:$0xff]
      %v311 = vld [vmem:[%s1 + $0x88] sm:$0xff]
      %v312 = vld [vmem:[%s1 + $0x90] sm:$0xff]
      %v313 = vld [vmem:[%s1 + $0x98] sm:$0xff]
      %v314 = vld [vmem:[%s1 + $0xa0] sm:$0xff]
      %v315 = vld [vmem:[%s1 + $0xa8] sm:$0xff]
      %v316 = vld [vmem:[%s1 + $0xb0] sm:$0xff]
      %v317 = vld [vmem:[%s1 + $0xb8] sm:$0xff]
      %v318 = vld [vmem:[%s2] sm:$0x1]
      %v320 = vlaneseq
      %v321 = vshrl.u32 %v320, 7
      %v322 = vsub.s32 0, %v321
      %v323 = vrot.slane %v318, %v322
      %v326 = vsel %vm291, %v281, 0
      %v329 = vsel %vm291, %v282, 0
      %331 = vmatprep.subr.mxu0 0.0
      %332 = vmatpush1.msra.mxu0 %v294
      %333 = vmatprep.subr.mxu0 0.0
      %334 = vmatpush1.msra.mxu0 %v295
      %335 = vmatprep.subr.mxu0 0.0
      %336 = vmatpush1.msra.mxu0 %v296
      %337 = vmatprep.subr.mxu0 0.0
      %338 = vmatpush1.msra.mxu0 %v297
      %339 = vmatprep.subr.mxu0 0.0
      %340 = vmatpush1.msra.mxu0 %v298
      %341 = vmatprep.subr.mxu0 0.0
      %342 = vmatpush1.msra.mxu0 %v299
      %343 = vmatprep.subr.mxu0 0.0
      %344 = vmatpush1.msra.mxu0 %v300
      %345 = vmatprep.subr.mxu0 0.0
      %346 = vmatpush1.msra.mxu0 %v301
      %347 = vmatprep.subr.mxu0 0.0
      %348 = vmatpush1.msra.mxu0 %v302
      %349 = vmatprep.subr.mxu0 0.0
      %350 = vmatpush1.msra.mxu0 %v303
      %351 = vmatprep.subr.mxu0 0.0
      %352 = vmatpush1.msra.mxu0 %v304
      %353 = vmatprep.subr.mxu0 0.0
      %354 = vmatpush1.msra.mxu0 %v305
      %355 = vmatprep.subr.mxu0 0.0
      %356 = vmatpush1.msra.mxu0 %v306
      %357 = vmatprep.subr.mxu0 0.0
      %358 = vmatpush1.msra.mxu0 %v307
      %359 = vmatprep.subr.mxu0 0.0
      %360 = vmatpush1.msra.mxu0 %v308
      %361 = vmatprep.subr.mxu0 0.0
      %362 = vmatpush1.msra.mxu0 %v309
      %363 = vmatprep.subr.mxu0 0.0
      %364 = vmatpush1.msra.mxu0 %v310
      %365 = vmatprep.subr.mxu0 0.0
      %366 = vmatpush1.msra.mxu0 %v311
      %367 = vmatprep.subr.mxu0 0.0
      %368 = vmatpush1.msra.mxu0 %v312
      %369 = vmatprep.subr.mxu0 0.0
      %370 = vmatpush1.msra.mxu0 %v313
      %371 = vmatprep.subr.mxu0 0.0
      %372 = vmatpush1.msra.mxu0 %v314
      %373 = vmatprep.subr.mxu0 0.0
      %374 = vmatpush1.msra.mxu0 %v315
      %375 = vmatprep.subr.mxu0 0.0
      %376 = vmatpush1.msra.mxu0 %v316
      %377 = vmatprep.subr.mxu0 0.0
      %378 = vmatpush1.msra.mxu0 %v317
      %379 = vmatprep.subr.mxu0 0.0
      %380 = vmatpush1.msra.mxu0 0.0
      %381 = vmatprep.subr.mxu0 0.0
      %382 = vmatpush1.msra.mxu0 0.0
      %383 = vmatprep.subr.mxu0 0.0
      %384 = vmatpush1.msra.mxu0 0.0
      %385 = vmatprep.subr.mxu0 0.0
      %386 = vmatpush1.msra.mxu0 0.0
      %387 = vmatprep.subr.mxu0 0.0
      %388 = vmatpush1.msra.mxu0 0.0
      %389 = vmatprep.subr.mxu0 0.0
      %390 = vmatpush1.msra.mxu0 0.0
      %391 = vmatprep.subr.mxu0 0.0
      %392 = vmatpush1.msra.mxu0 0.0
      %393 = vmatprep.subr.mxu0 0.0
      %394 = vmatpush1.msra.mxu0 0.0
      %395 = vmatprep.mubr.f32.mxu0 %v326
      %396 = vmatmul.mubr.f32.gmra.mrb[0].mxu0 %v292
      %v397 = vpop.f32.mrb[0].mxu0
      %v398 = vadd.f32 %v323, %v397
      %v399 = vpop.f32.mrb[0].mxu0
      %400 = vmatprep.mubr.f32.mxu0 %v329
      %401 = vmatmul.mubr.f32.gmra.mrb[0].mxu0 %v293
      %v402 = vpop.f32.mrb[0].mxu0
      %v403 = vadd.f32 %v323, %v402
      %v404 = vpop.f32.mrb[0].mxu0
      %405 = vdwg.mxu0
      %v406 = vmax.f32 %v398, 0.0
      %v407 = vmax.f32 %v403, 0.0
      %v408 = vrot.slane %v406, 7
      %v409 = vrot.slane %v407, 7
      %v410 = vsel %vm263, %v408, %v409
      %v411 = vsel %vm263, %v409, %v408
      %v412 = vsel %vm268, %v411, 0.0
      %v413 = vsel %vm269, %v410, 0.0
      %v414 = vrot.slane %v406, 1
      %v415 = vrot.slane %v407, 1
      %v416 = vsel %vm274, %v414, %v415
      %v417 = vsel %vm274, %v415, %v414
      %v418 = vsel %vm279, %v416, 0.0
      %v419 = vsel %vm280, %v417, 0.0
      %v420 = vld [vmem:[%s3] sm:$0xff]
      %v421 = vld [vmem:[%s3 + $0x8] sm:$0xff]
      %v422 = vld [vmem:[%s3 + $0x10] sm:$0xff]
      %v423 = vld [vmem:[%s3 + $0x18] sm:$0xff]
      %v424 = vld [vmem:[%s3 + $0x20] sm:$0xff]
      %v425 = vld [vmem:[%s3 + $0x28] sm:$0xff]
      %v426 = vld [vmem:[%s3 + $0x30] sm:$0xff]
      %v427 = vld [vmem:[%s3 + $0x38] sm:$0xff]
      %v428 = vld [vmem:[%s3 + $0x40] sm:$0xff]
      %v429 = vld [vmem:[%s3 + $0x48] sm:$0xff]
      %v430 = vld [vmem:[%s3 + $0x50] sm:$0xff]
      %v431 = vld [vmem:[%s3 + $0x58] sm:$0xff]
      %v432 = vld [vmem:[%s3 + $0x60] sm:$0xff]
      %v433 = vld [vmem:[%s3 + $0x68] sm:$0xff]
      %v434 = vld [vmem:[%s3 + $0x70] sm:$0xff]
      %v435 = vld [vmem:[%s3 + $0x78] sm:$0xff]
      %v436 = vld [vmem:[%s3 + $0x80] sm:$0xff]
      %v437 = vld [vmem:[%s3 + $0x88] sm:$0xff]
      %v438 = vld [vmem:[%s3 + $0x90] sm:$0xff]
      %v439 = vld [vmem:[%s3 + $0x98] sm:$0xff]
      %v440 = vld [vmem:[%s3 + $0xa0] sm:$0xff]
      %v441 = vld [vmem:[%s3 + $0xa8] sm:$0xff]
      %v442 = vld [vmem:[%s3 + $0xb0] sm:$0xff]
      %v443 = vld [vmem:[%s3 + $0xb8] sm:$0xff]
      %v444 = vld [vmem:[%s3 + $0xc0] sm:$0xff]
      %v445 = vld [vmem:[%s3 + $0xc8] sm:$0xff]
      %v446 = vld [vmem:[%s3 + $0xd0] sm:$0xff]
      %v447 = vld [vmem:[%s3 + $0xd8] sm:$0xff]
      %v448 = vld [vmem:[%s3 + $0xe0] sm:$0xff]
      %v449 = vld [vmem:[%s3 + $0xe8] sm:$0xff]
      %v450 = vld [vmem:[%s3 + $0xf0] sm:$0xff]
      %v451 = vld [vmem:[%s3 + $0xf8] sm:$0xff]
      %v452 = vld [vmem:[%s3 + $0x100] sm:$0xff]
      %v453 = vld [vmem:[%s3 + $0x108] sm:$0xff]
      %v454 = vld [vmem:[%s3 + $0x110] sm:$0xff]
      %v455 = vld [vmem:[%s3 + $0x118] sm:$0xff]
      %v456 = vld [vmem:[%s3 + $0x120] sm:$0xff]
      %v457 = vld [vmem:[%s3 + $0x128] sm:$0xff]
      %v458 = vld [vmem:[%s3 + $0x130] sm:$0xff]
      %v459 = vld [vmem:[%s3 + $0x138] sm:$0xff]
      %v460 = vld [vmem:[%s3 + $0x140] sm:$0xff]
      %v461 = vld [vmem:[%s3 + $0x148] sm:$0xff]
      %v462 = vld [vmem:[%s3 + $0x150] sm:$0xff]
      %v463 = vld [vmem:[%s3 + $0x158] sm:$0xff]
      %v464 = vld [vmem:[%s3 + $0x160] sm:$0xff]
      %v465 = vld [vmem:[%s3 + $0x168] sm:$0xff]
      %v466 = vld [vmem:[%s3 + $0x170] sm:$0xff]
      %v467 = vld [vmem:[%s3 + $0x178] sm:$0xff]
      %v468 = vld [vmem:[%s4] sm:$0x1]
      %v470 = vlaneseq
      %v471 = vshrl.u32 %v470, 7
      %v472 = vsub.s32 0, %v471
      %v473 = vrot.slane %v468, %v472
      %475 = vmatprep.subr.mxu0 0.0
      %476 = vmatpush1.msra.mxu0 %v420
      %477 = vmatprep.subr.mxu0 0.0
      %478 = vmatpush1.msra.mxu0 %v421
      %479 = vmatprep.subr.mxu0 0.0
      %480 = vmatpush1.msra.mxu0 %v422
      %481 = vmatprep.subr.mxu0 0.0
      %482 = vmatpush1.msra.mxu0 %v423
      %483 = vmatprep.subr.mxu0 0.0
      %484 = vmatpush1.msra.mxu0 %v424
      %485 = vmatprep.subr.mxu0 0.0
      %486 = vmatpush1.msra.mxu0 %v425
      %487 = vmatprep.subr.mxu0 0.0
      %488 = vmatpush1.msra.mxu0 %v426
      %489 = vmatprep.subr.mxu0 0.0
      %490 = vmatpush1.msra.mxu0 %v427
      %491 = vmatprep.subr.mxu0 0.0
      %492 = vmatpush1.msra.mxu0 %v428
      %493 = vmatprep.subr.mxu0 0.0
      %494 = vmatpush1.msra.mxu0 %v429
      %495 = vmatprep.subr.mxu0 0.0
      %496 = vmatpush1.msra.mxu0 %v430
      %497 = vmatprep.subr.mxu0 0.0
      %498 = vmatpush1.msra.mxu0 %v431
      %499 = vmatprep.subr.mxu0 0.0
      %500 = vmatpush1.msra.mxu0 %v432
      %501 = vmatprep.subr.mxu0 0.0
      %502 = vmatpush1.msra.mxu0 %v433
      %503 = vmatprep.subr.mxu0 0.0
      %504 = vmatpush1.msra.mxu0 %v434
      %505 = vmatprep.subr.mxu0 0.0
      %506 = vmatpush1.msra.mxu0 %v435
      %507 = vmatprep.subr.mxu0 0.0
      %508 = vmatpush1.msra.mxu0 %v436
      %509 = vmatprep.subr.mxu0 0.0
      %510 = vmatpush1.msra.mxu0 %v437
      %511 = vmatprep.subr.mxu0 0.0
      %512 = vmatpush1.msra.mxu0 %v438
      %513 = vmatprep.subr.mxu0 0.0
      %514 = vmatpush1.msra.mxu0 %v439
      %515 = vmatprep.subr.mxu0 0.0
      %516 = vmatpush1.msra.mxu0 %v440
      %517 = vmatprep.subr.mxu0 0.0
      %518 = vmatpush1.msra.mxu0 %v441
      %519 = vmatprep.subr.mxu0 0.0
      %520 = vmatpush1.msra.mxu0 %v442
      %521 = vmatprep.subr.mxu0 0.0
      %522 = vmatpush1.msra.mxu0 %v443
      %523 = vmatprep.subr.mxu0 0.0
      %524 = vmatpush1.msra.mxu0 %v444
      %525 = vmatprep.subr.mxu0 0.0
      %526 = vmatpush1.msra.mxu0 %v445
      %527 = vmatprep.subr.mxu0 0.0
      %528 = vmatpush1.msra.mxu0 %v446
      %529 = vmatprep.subr.mxu0 0.0
      %530 = vmatpush1.msra.mxu0 %v447
      %531 = vmatprep.subr.mxu0 0.0
      %532 = vmatpush1.msra.mxu0 %v448
      %533 = vmatprep.subr.mxu0 0.0
      %534 = vmatpush1.msra.mxu0 %v449
      %535 = vmatprep.subr.mxu0 0.0
      %536 = vmatpush1.msra.mxu0 %v450
      %537 = vmatprep.subr.mxu0 0.0
      %538 = vmatpush1.msra.mxu0 %v451
      %539 = vmatprep.mubr.f32.mxu0 %v406
      %540 = vmatmul.mubr.f32.gmra.mrb[0].mxu0 %v412
      %v541 = vpop.f32.mrb[0].mxu0
      %v542 = vadd.f32 %v473, %v541
      %v543 = vpop.f32.mrb[0].mxu0
      %544 = vmatprep.mubr.f32.mxu0 %v407
      %545 = vmatmul.mubr.f32.gmra.mrb[0].mxu0 %v413
      %v546 = vpop.f32.mrb[0].mxu0
      %v547 = vadd.f32 %v473, %v546
      %v548 = vpop.f32.mrb[0].mxu0
      %549 = vdwg.mxu0
      %550 = vmatprep.subr.mxu0 0.0
      %551 = vmatpush1.msra.mxu0 %v452
      %552 = vmatprep.subr.mxu0 0.0
      %553 = vmatpush1.msra.mxu0 %v453
      %554 = vmatprep.subr.mxu0 0.0
      %555 = vmatpush1.msra.mxu0 %v454
      %556 = vmatprep.subr.mxu0 0.0
      %557 = vmatpush1.msra.mxu0 %v455
      %558 = vmatprep.subr.mxu0 0.0
      %559 = vmatpush1.msra.mxu0 %v456
      %560 = vmatprep.subr.mxu0 0.0
      %561 = vmatpush1.msra.mxu0 %v457
      %562 = vmatprep.subr.mxu0 0.0
      %563 = vmatpush1.msra.mxu0 %v458
      %564 = vmatprep.subr.mxu0 0.0
      %565 = vmatpush1.msra.mxu0 %v459
      %566 = vmatprep.subr.mxu0 0.0
      %567 = vmatpush1.msra.mxu0 %v460
      %568 = vmatprep.subr.mxu0 0.0
      %569 = vmatpush1.msra.mxu0 %v461
      %570 = vmatprep.subr.mxu0 0.0
      %571 = vmatpush1.msra.mxu0 %v462
      %572 = vmatprep.subr.mxu0 0.0
      %573 = vmatpush1.msra.mxu0 %v463
      %574 = vmatprep.subr.mxu0 0.0
      %575 = vmatpush1.msra.mxu0 %v464
      %576 = vmatprep.subr.mxu0 0.0
      %577 = vmatpush1.msra.mxu0 %v465
      %578 = vmatprep.subr.mxu0 0.0
      %579 = vmatpush1.msra.mxu0 %v466
      %580 = vmatprep.subr.mxu0 0.0
      %581 = vmatpush1.msra.mxu0 %v467
      %582 = vmatprep.subr.mxu0 0.0
      %583 = vmatpush1.msra.mxu0 0.0
      %584 = vmatprep.subr.mxu0 0.0
      %585 = vmatpush1.msra.mxu0 0.0
      %586 = vmatprep.subr.mxu0 0.0
      %587 = vmatpush1.msra.mxu0 0.0
      %588 = vmatprep.subr.mxu0 0.0
      %589 = vmatpush1.msra.mxu0 0.0
      %590 = vmatprep.subr.mxu0 0.0
      %591 = vmatpush1.msra.mxu0 0.0
      %592 = vmatprep.subr.mxu0 0.0
      %593 = vmatpush1.msra.mxu0 0.0
      %594 = vmatprep.subr.mxu0 0.0
      %595 = vmatpush1.msra.mxu0 0.0
      %596 = vmatprep.subr.mxu0 0.0
      %597 = vmatpush1.msra.mxu0 0.0
      %598 = vmatprep.subr.mxu0 0.0
      %599 = vmatpush1.msra.mxu0 0.0
      %600 = vmatprep.subr.mxu0 0.0
      %601 = vmatpush1.msra.mxu0 0.0
      %602 = vmatprep.subr.mxu0 0.0
      %603 = vmatpush1.msra.mxu0 0.0
      %604 = vmatprep.subr.mxu0 0.0
      %605 = vmatpush1.msra.mxu0 0.0
      %606 = vmatprep.subr.mxu0 0.0
      %607 = vmatpush1.msra.mxu0 0.0
      %608 = vmatprep.subr.mxu0 0.0
      %609 = vmatpush1.msra.mxu0 0.0
      %610 = vmatprep.subr.mxu0 0.0
      %611 = vmatpush1.msra.mxu0 0.0
      %612 = vmatprep.subr.mxu0 0.0
      %613 = vmatpush1.msra.mxu0 0.0
      %614 = vmatprep.mubr.f32.mxu0 0.0
      %615 = vmatmul.mubr.f32.gmra.mrb[0].mxu0 %v418
      %v616 = vpop.f32.mrb[0].mxu0
      %v617 = vadd.f32 %v542, %v616
      %v618 = vpop.f32.mrb[0].mxu0
      %619 = vmatprep.mubr.f32.mxu0 0.0
      %620 = vmatmul.mubr.f32.gmra.mrb[0].mxu0 %v419
      %v621 = vpop.f32.mrb[0].mxu0
      %v622 = vadd.f32 %v547, %v621
      %v623 = vpop.f32.mrb[0].mxu0
      %624 = vdwg.mxu0
      %v625 = vmax.f32 %v617, 0.0
      %v626 = vmax.f32 %v622, 0.0
      %627 = vst [vmem:[%s226] sm:$0xff] %v625
      %628 = vst [vmem:[%s226 + $0x8] sm:$0xff] %v626
      %s629 = smul.u32 2, %s16
      %p630 = scmp.lt.s32.totalorder %s629, 3
      %s631 = scalar_select %p630, %s629, 3
      %s632 = smul.addr %s631, 8
      %s633 = scalar_lea.vmem %s5, %s632
      // Predicated region
      $region41: #{double_conv_nhwc.1} parent=39 // pred_check
        %p634 = pneg %p144
      $region42: #{double_conv_nhwc.1} parent=39 // pred_check_branch
        %636 = sbr.rel (%p634) target = $region44
      $region43: #{double_conv_nhwc.1} parent=39 // pred_region
        %s637 = smul.u32 2, %s16
      $region44: #{double_conv_nhwc.1} parent=39 // pred_fallthru
        _
    $region40: #{double_conv_nhwc.1} parent=5 // pred_fallthru
      _
    %p638 = scmp.le.s32.totalorder 2, %s11
    // Predicated region
    $region45: #{double_conv_nhwc.1} parent=5 // pred_check
      %p639 = pneg %p638
    $region46: #{double_conv_nhwc.1} parent=5 // pred_check_branch
      %641 = sbr.rel (%p639) target = $region48
    $region47: #{double_conv_nhwc.1} parent=5 // pred_region
      %s642 = ssub.s32 %s11, 2
      // Predicated region
      $region49: #{double_conv_nhwc.1} parent=47 // pred_check
        %p643 = pneg %p150
      $region50: #{double_conv_nhwc.1} parent=47 // pred_check_branch
        %645 = sbr.rel (%p643) target = $region52
      $region51: #{double_conv_nhwc.1} parent=47 // pred_region
        %s646 = smul.u32 2, %s17
        %p647 = scmp.lt.s32.totalorder %s646, 3
        %s648 = scalar_select %p647, %s646, 3
        %s649 = smul.addr %s648, 8
        %s650 = scalar_lea.vmem %s5, %s649
      $region52: #{double_conv_nhwc.1} parent=47 // pred_fallthru
        _
    $region48: #{double_conv_nhwc.1} parent=5 // pred_fallthru
      _
  $region6: #{double_conv_nhwc.1} parent=0 // loop_footer
    %s15 = sadd.s32 1, %s11
  $region7: #{double_conv_nhwc.1} parent=0 // loop_footer_branch
    %10 = sbr.rel target = $region3
  $region8: #{double_conv_nhwc.1} parent=0 // loop_exit
    _

</llo_original>
